<compile_context>
chip_gen: v7x
topology: tpu7x:2x2x1
jax: 0.10.0
libtpu: 0.0.40
codegen_flags: <defaults>
</compile_context>

<pallas_src>
import jax
import jax.numpy as jnp
from jax.experimental import pallas as pl
from jax.experimental.pallas import tpu as pltpu

_MAX_BLOCK_BYTES = 8 << 20     # per-block cap; 4x (in+out double-buffer) = 32 MiB
_VMEM_LIMIT_BYTES = 48 << 20   # explicit scoped-VMEM limit; < v7x 64 MiB physical
_SMALL_BYTES = 1 << 20         # below this, launch overhead dominates -> skip kernel


def _copy_kernel(x_ref, o_ref):
    # Lane-dense VMEM tile copy; identical block shapes on both sides.
    o_ref[...] = x_ref[...]


def _choose_2d(n: int):
    """Flatten n elements as (rows, cols) with cols a large multiple of 128.
    Returns None when n is not 128-divisible (caller uses the zero-cost path
    instead of risking a whole-array single-block DMA)."""
    for cols in (4096, 2048, 1024, 512, 256, 128):
        if n % cols == 0:
            return n // cols, cols
    return None


def _choose_row_tile(rows: int, cols: int, itemsize: int) -> int:
    """Sublane-aligned row tile sized to the block budget. The last grid tile
    may be partial (cdiv grid + Pallas boundary masking); no divisibility of
    `rows` is required."""
    sublane = 8 * max(1, 4 // max(1, itemsize))   # 8 f32, 16 bf16, 32 i8
    if rows <= sublane:
        return rows                                # full-extent row block
    budget_rows = max(1, _MAX_BLOCK_BYTES // max(1, cols * itemsize))
    tr = max(sublane, (budget_rows // sublane) * sublane)
    if rows >= 4 * sublane:
        # Keep >= 4 grid steps so v7x's two TensorCores both get work and the
        # DMA pipeline always has a next tile to overlap with.
        quarter = max(sublane, (pl.cdiv(rows, 4) // sublane) * sublane)
        tr = min(tr, quarter)
    return min(tr, rows)


def _pallas_copy_2d(x2: jax.Array, rows: int, cols: int, donate_input: bool = False):
    tr = _choose_row_tile(rows, cols, jnp.dtype(x2.dtype).itemsize)
    kwargs = {}
    if donate_input:
        kwargs["input_output_aliases"] = {0: 0}
    return pl.pallas_call(
        _copy_kernel,
        out_shape=jax.ShapeDtypeStruct((rows, cols), x2.dtype),
        grid=(pl.cdiv(rows, tr),),
        in_specs=[pl.BlockSpec((tr, cols), lambda i: (i, 0))],
        out_specs=pl.BlockSpec((tr, cols), lambda i: (i, 0)),
        compiler_params=pltpu.CompilerParams(
            dimension_semantics=("parallel",),
            vmem_limit_bytes=_VMEM_LIMIT_BYTES,
        ),
        **kwargs,
    )(x2)


def pallas_unsqueeze(x: jax.Array, dim: int, *, use_kernel=None,
                     donate_input: bool = False) -> jax.Array:
    """torch.unsqueeze(x, dim) semantics.

    use_kernel:
      None  -> auto: metadata-only reshape for tiny / 128-indivisible inputs,
               Pallas lane-dense tiled copy otherwise.
      False -> always metadata-only (zero HBM traffic).
      True  -> force the Pallas copy when the shape allows it.
    """
    nd = x.ndim
    d = dim + nd + 1 if dim < 0 else dim
    if not (0 <= d <= nd):
        raise ValueError(f"dim {dim} out of range for input of ndim {nd}")
    out_shape = x.shape[:d] + (1,) + x.shape[d:]

    if x.size == 0 or use_kernel is False:
        return jnp.reshape(x, out_shape)

    itemsize = jnp.dtype(x.dtype).itemsize
    two_d = _choose_2d(x.size)
    small = (x.size * itemsize) < _SMALL_BYTES
    if two_d is None or (use_kernel is None and small):
        # Fast path: unsqueeze is metadata-only; skip the kernel entirely.
        return jnp.reshape(x, out_shape)

    rows, cols = two_d
    x2 = jnp.reshape(x, (rows, cols))                      # free metadata reshape
    y2 = _pallas_copy_2d(x2, rows, cols, donate_input=donate_input)
    return jnp.reshape(y2, out_shape)                      # free metadata reshape


class Unsqueeze:
    """JAX/Pallas port of vschaos.modules.Unsqueeze (no parameters)."""

    def __init__(self, dim: int, use_kernel=None):
        self.dim = dim
        self.use_kernel = use_kernel

    def __call__(self, x: jax.Array) -> jax.Array:
        return pallas_unsqueeze(x, self.dim, use_kernel=self.use_kernel)


if __name__ == "__main__":
    key = jax.random.PRNGKey(0)
    x = jax.random.normal(key, (2, 4, 16, 16), dtype=jnp.float32)

    # Default (auto) path: tiny input -> metadata-only fast path, zero HBM traffic.
    module = Unsqueeze(dim=1)
    out = jax.block_until_ready(module(x))
    ref = jnp.expand_dims(x, 1)
    assert out.shape == (2, 1, 4, 16, 16), out.shape
    assert out.dtype == x.dtype
    assert bool(jnp.array_equal(out, ref))

    # Force the Pallas copy kernel on the same small input (lane-dense single block).
    out_k = jax.block_until_ready(pallas_unsqueeze(x, 1, use_kernel=True))
    assert out_k.shape == ref.shape and bool(jnp.array_equal(out_k, ref))

    # Negative-dim and middle-dim cases through the kernel path.
    out2 = jax.block_until_ready(pallas_unsqueeze(x, -1, use_kernel=True))
    assert out2.shape == (2, 4, 16, 16, 1), out2.shape
    assert bool(jnp.array_equal(out2, jnp.expand_dims(x, -1)))
    out3 = jax.block_until_ready(pallas_unsqueeze(x, 2, use_kernel=True))
    assert out3.shape == (2, 4, 1, 16, 16), out3.shape
    assert bool(jnp.array_equal(out3, jnp.expand_dims(x, 2)))

    # 1 MiB input: auto path takes the multi-step (grid=4) lane-dense tiled copy.
    xl = jax.random.normal(jax.random.PRNGKey(1), (2, 16, 64, 128), dtype=jnp.float32)
    outl = jax.block_until_ready(Unsqueeze(dim=2)(xl))
    assert outl.shape == (2, 16, 1, 64, 128), outl.shape
    assert bool(jnp.array_equal(outl, jnp.expand_dims(xl, 2)))

    # bf16 (packed sublanes) through the kernel path.
    xb = xl.astype(jnp.bfloat16)
    outb = jax.block_until_ready(pallas_unsqueeze(xb, 0, use_kernel=True))
    assert outb.shape == (1, 2, 16, 64, 128), outb.shape
    assert bool(jnp.array_equal(outb, jnp.expand_dims(xb, 0)))

    # 128-indivisible element count: robust metadata-only fallback (no giant
    # single-block DMA, no compile failure).
    xo = jax.random.normal(jax.random.PRNGKey(2), (3, 5, 7), dtype=jnp.float32)
    outo = jax.block_until_ready(pallas_unsqueeze(xo, 1, use_kernel=True))
    assert outo.shape == (3, 1, 5, 7), outo.shape
    assert bool(jnp.array_equal(outo, jnp.expand_dims(xo, 1)))

    print("KERNEL_OK")
</pallas_src>

<mosaic_0001>
module attributes {stable_mosaic.version = 11 : i64} {
  func.func @_copy_kernel(%arg0: i32, %arg1: memref<1x2048xf32, #tpu.memory_space<vmem>>, %arg2: memref<1x2048xf32, #tpu.memory_space<vmem>>) attributes {dimension_semantics = [#tpu.dimension_semantics<parallel>], iteration_bounds = array<i64: 1>, scalar_prefetch = 0 : i64, scratch_operands = 0 : i64, tpu.core_type = #tpu.core_type<tc>, window_params = [{transform_indices = @transform_0, window_bounds = array<i64: 1, 2048>}, {transform_indices = @transform_1, window_bounds = array<i64: 1, 2048>}]} {
    %c0 = arith.constant 0 : index
    %c0_0 = arith.constant 0 : index
    %0 = vector.load %arg1[%c0, %c0_0] : memref<1x2048xf32, #tpu.memory_space<vmem>>, vector<1x2048xf32>
    %c0_1 = arith.constant 0 : index
    %c0_2 = arith.constant 0 : index
    %1 = vector.load %arg2[%c0_1, %c0_2] : memref<1x2048xf32, #tpu.memory_space<vmem>>, vector<1x2048xf32>
    tpu.vector_store %arg2[%c0_1, %c0_2], %0 {strides = array<i32>} : memref<1x2048xf32, #tpu.memory_space<vmem>>, vector<1x2048xf32>,
    return
  }
  func.func @transform_0(%arg0: i32) -> (i32, i32) {
    %c0_i32 = arith.constant 0 : i32
    %c0_i32_0 = arith.constant 0 : i32
    return %arg0, %c0_i32 : i32, i32
  }
  func.func @transform_1(%arg0: i32) -> (i32, i32) {
    %c0_i32 = arith.constant 0 : i32
    %c0_i32_0 = arith.constant 0 : i32
    return %arg0, %c0_i32 : i32, i32
  }
}

</mosaic_0001>

<llo_original>
// kernel: tpu_custom_call.1
$region0: #{tpu_custom_call.1}
  #allocation0 [shape = 'u32[]', space=smem, size = 0x4, offset = 0x4, fixed_abs, tag = 'smem constant byte address 0x4 - core index']
  #allocation1 [shape = 'u32[144,128]{1,0:T(1,128)}', space=vmem, size = 0x12000, scoped, tag = 'internal scratch']
  %s0 = inlined_call_operand.hbm [shape: f32[1,2048], index: 0, kind: input, shape index: {}]
  %s1 = inlined_call_operand.hbm [shape: f32[1,2048], index: 1, kind: output, shape index: {}]
  %s2 = sld [smem:[#allocation0]]
  $region18: #{tpu_custom_call.1} parent=0
    _
  %s4 = ssub.s32 1, %s2
  %s5 = scalar_select 0, %s4, %s2
  $region1: #{tpu_custom_call.1} parent=0
    #allocation2 [shape = 'u8[8192]{0}', space=vmem, size = 0x2000, scoped, tag = 'input window, operand 0, single buffered']
    #allocation3 [shape = 's32[1]{0}', space=sflag, size = 0x4, scoped, tag = 'scoped memory for tpu_custom_call.1']
    #allocation4 [shape = 's32[1]{0}', space=sflag, size = 0x4, scoped, tag = 'scoped memory for tpu_custom_call.1']
    #allocation5 [shape = 'u8[8192]{0}', space=vmem, size = 0x2000, scoped, tag = 'output window, operand 0, single buffered']
    %6 = vsyncpa [#allocation3], 0
    %7 = vsyncpa [#allocation4], 0
    // Predicated region
    $region2: #{tpu_custom_call.1} parent=1 // pred_check
      _
    $region3: #{tpu_custom_call.1} parent=1 // pred_check_branch
      %9 = sbr.rel (0) target = $region5
    $region4: #{tpu_custom_call.1} parent=1 // pred_region
      %s11 = ssub.s32 256, 256
      %12 = vsyncadd [#allocation3], %s11
      %s14 = sshll.u32 [#allocation2], 4
      %s15 = int_to_ptr.vmem [resolvable:$true] %s14
      %17 = dma.hbm_to_vmem [thread:$0]  %s0, 256, %s15, [#allocation3]
    $region5: #{tpu_custom_call.1} parent=1 // pred_fallthru
      _
    // Predicated region
    $region6: #{tpu_custom_call.1} parent=1 // pred_check
      _
    $region7: #{tpu_custom_call.1} parent=1 // pred_check_branch
      %19 = sbr.rel (0) target = $region9
    $region8: #{tpu_custom_call.1} parent=1 // pred_region
      %20 = dma.done [#allocation3], 256
    $region9: #{tpu_custom_call.1} parent=1 // pred_fallthru
      _
    %v21 = vld [vmem:[#allocation2] sm:$0xff]
    %v22 = vld [vmem:[#allocation2 + $0x8] sm:$0xff]
    %23 = vst [vmem:[#allocation5] sm:$0xff] %v21
    %24 = vst [vmem:[#allocation5 + $0x8] sm:$0xff] %v22
    // Predicated region
    $region10: #{tpu_custom_call.1} parent=1 // pred_check
      _
    $region11: #{tpu_custom_call.1} parent=1 // pred_check_branch
      %26 = sbr.rel (0) target = $region13
    $region12: #{tpu_custom_call.1} parent=1 // pred_region
      %s28 = ssub.s32 256, 256
      %29 = vsyncadd [#allocation4], %s28
      %s31 = sshll.u32 [#allocation5], 4
      %s32 = int_to_ptr.vmem [resolvable:$true] %s31
      %34 = dma.vmem_to_hbm [thread:$0]  %s32, 256, %s1, [#allocation4]
    $region13: #{tpu_custom_call.1} parent=1 // pred_fallthru
      _
    // Predicated region
    $region14: #{tpu_custom_call.1} parent=1 // pred_check
      _
    $region15: #{tpu_custom_call.1} parent=1 // pred_check_branch
      %36 = sbr.rel (0) target = $region17
    $region16: #{tpu_custom_call.1} parent=1 // pred_region
      %37 = dma.done [#allocation4], 256
    $region17: #{tpu_custom_call.1} parent=1 // pred_fallthru
      _
    %38 = vsyncpa [#allocation3], 1
    %39 = vsyncpa [#allocation4], 1

</llo_original>
